<compile_context>
chip_gen: v7x
topology: tpu7x:2x2x1
jax: 0.10.0
libtpu: 0.0.40
codegen_flags: <defaults>
</compile_context>

<pallas_src>
import jax
import jax.numpy as jnp
from jax.experimental import pallas as pl
from jax.experimental.pallas import tpu as pltpu


def rnn_recurrence_kernel(x_ref, wih_ref, whh_ref, bias_ref, h_out_ref, xproj_ref):
    """x_ref:    (seq_len * batch_p, emb_p)   bf16  -- all timesteps, flattened
       wih_ref:  (emb_p, hid_p)               bf16  -- W_ih^T (padded)
       whh_ref:  (hid_p, hid_p)               bf16  -- W_hh^T (padded)
       bias_ref: (1, hid_p)                   f32   -- b_ih + b_hh (padded)
       h_out_ref:(batch_p, hid_p)             f32   -- final hidden state
       xproj_ref:(seq_len, batch_p, hid_p)    f32   -- VMEM scratch
    """
    seq_len, batch_p, hid_p = xproj_ref.shape

    # ---- Phase 1: one batched MXU matmul for ALL timesteps + folded bias ----
    xproj = (jnp.dot(x_ref[...], wih_ref[...],
                     preferred_element_type=jnp.float32)
             + bias_ref[...])                               # (seq*batch_p, hid_p) f32
    xproj_ref[...] = xproj.reshape(seq_len, batch_p, hid_p)

    # ---- Phase 2: serial recurrence, h carried in registers (f32) ----------
    whh = whh_ref[...]                                      # resident bf16 weights

    def step(t, h):
        pre = xproj_ref[t] + jnp.dot(h.astype(whh.dtype), whh,
                                     preferred_element_type=jnp.float32)
        return jnp.tanh(pre)                                # f32 elementwise

    h_final = jax.lax.fori_loop(
        0, seq_len, step,
        jnp.zeros((batch_p, hid_p), jnp.float32),
        unroll=True)                                        # short fixed trip count
    h_out_ref[...] = h_final


def _round_up(x, m):
    return (x + m - 1) // m * m


def rnn_forward(text, embedding, w_ih, w_hh, b_ih, b_hh, w_fc, b_fc):
    """text: (seq_len, batch) int32.  Returns (batch, output_dim) float32."""
    seq_len, batch = text.shape
    emb_dim = embedding.shape[1]
    hidden_dim = w_hh.shape[0]

    batch_p = _round_up(batch, 8)          # f32 sublanes
    emb_p = _round_up(emb_dim, 128)        # lanes
    hid_p = _round_up(hidden_dim, 128)     # lanes (v6e/v7x: prefer 256-multiples
                                           #        for large hidden if VMEM allows)

    # Embedding lookup (gather) in plain JAX glue.
    embedded = embedding[text].astype(jnp.bfloat16)         # (seq, batch, emb)

    # Zero-padded, lane/sublane aligned operands.  Zero padding keeps the math
    # exact: padded hidden lanes stay 0 through the whole recurrence.
    x_pad = jnp.zeros((seq_len, batch_p, emb_p), jnp.bfloat16)
    x_pad = x_pad.at[:, :batch, :emb_dim].set(embedded)
    x2d = x_pad.reshape(seq_len * batch_p, emb_p)

    wih_pad = jnp.zeros((emb_p, hid_p), jnp.bfloat16)
    wih_pad = wih_pad.at[:emb_dim, :hidden_dim].set(w_ih.T.astype(jnp.bfloat16))

    whh_pad = jnp.zeros((hid_p, hid_p), jnp.bfloat16)
    whh_pad = whh_pad.at[:hidden_dim, :hidden_dim].set(w_hh.T.astype(jnp.bfloat16))

    bias_pad = jnp.zeros((1, hid_p), jnp.float32)
    bias_pad = bias_pad.at[0, :hidden_dim].set((b_ih + b_hh).astype(jnp.float32))

    # Single kernel invocation (no grid): whole problem fits in VMEM.
    # For large hidden on v7x (64 MiB VMEM) set vmem_limit_bytes explicitly.
    h_final_p = pl.pallas_call(
        rnn_recurrence_kernel,
        out_shape=jax.ShapeDtypeStruct((batch_p, hid_p), jnp.float32),
        in_specs=[
            pl.BlockSpec(memory_space=pltpu.MemorySpace.VMEM),  # x (all steps)
            pl.BlockSpec(memory_space=pltpu.MemorySpace.VMEM),  # W_ih^T
            pl.BlockSpec(memory_space=pltpu.MemorySpace.VMEM),  # W_hh^T
            pl.BlockSpec(memory_space=pltpu.MemorySpace.VMEM),  # folded bias
        ],
        out_specs=pl.BlockSpec(memory_space=pltpu.MemorySpace.VMEM),
        scratch_shapes=[pltpu.VMEM((seq_len, batch_p, hid_p), jnp.float32)],
    )(x2d, wih_pad, whh_pad, bias_pad)

    # Un-pad and apply the FC head (one-shot tiny matmul) in plain JAX.
    h_final = h_final_p[:batch, :hidden_dim]
    return h_final @ w_fc.T.astype(jnp.float32) + b_fc


def reference_forward(text, embedding, w_ih, w_hh, b_ih, b_hh, w_fc, b_fc):
    """Pure-JAX f32 reference mirroring the PyTorch module semantics."""
    embedded = embedding[text]                              # (seq, batch, emb)
    batch = text.shape[1]
    hidden_dim = w_hh.shape[0]
    h = jnp.zeros((batch, hidden_dim), jnp.float32)

    def step(h, x_t):
        h_new = jnp.tanh(x_t @ w_ih.T + b_ih + h @ w_hh.T + b_hh)
        return h_new, h_new

    h_final, _ = jax.lax.scan(step, h, embedded)
    return h_final @ w_fc.T + b_fc


if __name__ == "__main__":
    # Small shapes consistent with the module's forward.
    input_dim = 64        # vocab size
    embedding_dim = 16
    hidden_dim = 32
    output_dim = 4
    seq_len = 8
    batch = 2

    key = jax.random.PRNGKey(0)
    k_emb, k_wih, k_whh, k_bih, k_bhh, k_wfc, k_bfc, k_txt = jax.random.split(key, 8)

    embedding = jax.random.normal(k_emb, (input_dim, embedding_dim), jnp.float32) * 0.1
    w_ih = jax.random.normal(k_wih, (hidden_dim, embedding_dim), jnp.float32) * 0.1
    w_hh = jax.random.normal(k_whh, (hidden_dim, hidden_dim), jnp.float32) * 0.1
    b_ih = jax.random.normal(k_bih, (hidden_dim,), jnp.float32) * 0.1
    b_hh = jax.random.normal(k_bhh, (hidden_dim,), jnp.float32) * 0.1
    w_fc = jax.random.normal(k_wfc, (output_dim, hidden_dim), jnp.float32) * 0.1
    b_fc = jax.random.normal(k_bfc, (output_dim,), jnp.float32) * 0.1

    text = jax.random.randint(k_txt, (seq_len, batch), 0, input_dim, jnp.int32)

    out = rnn_forward(text, embedding, w_ih, w_hh, b_ih, b_hh, w_fc, b_fc)
    out = jax.block_until_ready(out)

    ref = reference_forward(text, embedding, w_ih, w_hh, b_ih, b_hh, w_fc, b_fc)
    assert out.shape == (batch, output_dim)
    # bf16 MXU operands (f32 accumulation) -> loosened tolerance vs f32 reference.
    assert jnp.allclose(out, ref, atol=1e-2, rtol=1e-2), "mismatch vs reference"

    print("KERNEL_OK")
</pallas_src>

<mosaic_0001>
module attributes {stable_mosaic.version = 11 : i64} {
  func.func @rnn_recurrence_kernel(%arg0: memref<64x128xbf16, #tpu.memory_space<vmem>>, %arg1: memref<128x128xbf16, #tpu.memory_space<vmem>>, %arg2: memref<128x128xbf16, #tpu.memory_space<vmem>>, %arg3: memref<1x128xf32, #tpu.memory_space<vmem>>, %arg4: memref<8x128xf32, #tpu.memory_space<vmem>>, %arg5: memref<8x8x128xf32, #tpu.memory_space<vmem>>) attributes {dimension_semantics = [], scalar_prefetch = 0 : i64, scratch_operands = 1 : i64, tpu.core_type = #tpu.core_type<tc>} {
    %c0 = arith.constant 0 : index
    %c0_0 = arith.constant 0 : index
    %0 = vector.load %arg0[%c0, %c0_0] : memref<64x128xbf16, #tpu.memory_space<vmem>>, vector<64x128xbf16>
    %c0_1 = arith.constant 0 : index
    %c0_2 = arith.constant 0 : index
    %1 = vector.load %arg1[%c0_1, %c0_2] : memref<128x128xbf16, #tpu.memory_space<vmem>>, vector<128x128xbf16>
    %cst = arith.constant dense<0.000000e+00> : vector<64x128xf32>
    %2 = tpu.matmul %0, %1, %cst {dimension_numbers = #tpu.dot_dimension_numbers<[1], [0], [0], [1], [0, 0, 1, 1], [], []>} : vector<64x128xbf16>, vector<128x128xbf16>, vector<64x128xf32> -> vector<64x128xf32>
    %c0_3 = arith.constant 0 : index
    %c0_4 = arith.constant 0 : index
    %3 = vector.load %arg3[%c0_3, %c0_4] : memref<1x128xf32, #tpu.memory_space<vmem>>, vector<1x128xf32>
    %4 = vector.broadcast %3 : vector<1x128xf32> to vector<64x128xf32>
    %5 = arith.addf %2, %4 : vector<64x128xf32>
    %6 = vector.shape_cast %5 : vector<64x128xf32> to vector<8x8x128xf32>
    %c0_5 = arith.constant 0 : index
    %c0_6 = arith.constant 0 : index
    %c0_7 = arith.constant 0 : index
    %7 = vector.load %arg5[%c0_5, %c0_6, %c0_7] : memref<8x8x128xf32, #tpu.memory_space<vmem>>, vector<8x8x128xf32>
    tpu.vector_store %arg5[%c0_5, %c0_6, %c0_7], %6 {strides = array<i32>} : memref<8x8x128xf32, #tpu.memory_space<vmem>>, vector<8x8x128xf32>,
    %c0_8 = arith.constant 0 : index
    %c0_9 = arith.constant 0 : index
    %8 = vector.load %arg2[%c0_8, %c0_9] : memref<128x128xbf16, #tpu.memory_space<vmem>>, vector<128x128xbf16>
    %cst_10 = arith.constant 0.000000e+00 : f32
    %9 = vector.broadcast %cst_10 : f32 to vector<8x128xf32>
    %c0_i32 = arith.constant 0 : i32
    %10 = arith.index_cast %c0_i32 : i32 to index
    %c0_11 = arith.constant 0 : index
    %c0_12 = arith.constant 0 : index
    %11 = vector.load %arg5[%10, %c0_11, %c0_12] : memref<8x8x128xf32, #tpu.memory_space<vmem>>, vector<1x8x128xf32>
    %12 = vector.shape_cast %11 : vector<1x8x128xf32> to vector<8x128xf32>
    %13 = arith.truncf %9 : vector<8x128xf32> to vector<8x128xbf16>
    %cst_13 = arith.constant dense<0.000000e+00> : vector<8x128xf32>
    %14 = tpu.matmul %13, %8, %cst_13 {dimension_numbers = #tpu.dot_dimension_numbers<[1], [0], [0], [1], [0, 0, 1, 1], [], []>} : vector<8x128xbf16>, vector<128x128xbf16>, vector<8x128xf32> -> vector<8x128xf32>
    %15 = arith.addf %12, %14 : vector<8x128xf32>
    %16 = math.tanh %15 : vector<8x128xf32>
    %c1_i32 = arith.constant 1 : i32
    %17 = arith.index_cast %c1_i32 : i32 to index
    %c0_14 = arith.constant 0 : index
    %c0_15 = arith.constant 0 : index
    %18 = vector.load %arg5[%17, %c0_14, %c0_15] : memref<8x8x128xf32, #tpu.memory_space<vmem>>, vector<1x8x128xf32>
    %19 = vector.shape_cast %18 : vector<1x8x128xf32> to vector<8x128xf32>
    %20 = arith.truncf %16 : vector<8x128xf32> to vector<8x128xbf16>
    %cst_16 = arith.constant dense<0.000000e+00> : vector<8x128xf32>
    %21 = tpu.matmul %20, %8, %cst_16 {dimension_numbers = #tpu.dot_dimension_numbers<[1], [0], [0], [1], [0, 0, 1, 1], [], []>} : vector<8x128xbf16>, vector<128x128xbf16>, vector<8x128xf32> -> vector<8x128xf32>
    %22 = arith.addf %19, %21 : vector<8x128xf32>
    %23 = math.tanh %22 : vector<8x128xf32>
    %c2_i32 = arith.constant 2 : i32
    %24 = arith.index_cast %c2_i32 : i32 to index
    %c0_17 = arith.constant 0 : index
    %c0_18 = arith.constant 0 : index
    %25 = vector.load %arg5[%24, %c0_17, %c0_18] : memref<8x8x128xf32, #tpu.memory_space<vmem>>, vector<1x8x128xf32>
    %26 = vector.shape_cast %25 : vector<1x8x128xf32> to vector<8x128xf32>
    %27 = arith.truncf %23 : vector<8x128xf32> to vector<8x128xbf16>
    %cst_19 = arith.constant dense<0.000000e+00> : vector<8x128xf32>
    %28 = tpu.matmul %27, %8, %cst_19 {dimension_numbers = #tpu.dot_dimension_numbers<[1], [0], [0], [1], [0, 0, 1, 1], [], []>} : vector<8x128xbf16>, vector<128x128xbf16>, vector<8x128xf32> -> vector<8x128xf32>
    %29 = arith.addf %26, %28 : vector<8x128xf32>
    %30 = math.tanh %29 : vector<8x128xf32>
    %c3_i32 = arith.constant 3 : i32
    %31 = arith.index_cast %c3_i32 : i32 to index
    %c0_20 = arith.constant 0 : index
    %c0_21 = arith.constant 0 : index
    %32 = vector.load %arg5[%31, %c0_20, %c0_21] : memref<8x8x128xf32, #tpu.memory_space<vmem>>, vector<1x8x128xf32>
    %33 = vector.shape_cast %32 : vector<1x8x128xf32> to vector<8x128xf32>
    %34 = arith.truncf %30 : vector<8x128xf32> to vector<8x128xbf16>
    %cst_22 = arith.constant dense<0.000000e+00> : vector<8x128xf32>
    %35 = tpu.matmul %34, %8, %cst_22 {dimension_numbers = #tpu.dot_dimension_numbers<[1], [0], [0], [1], [0, 0, 1, 1], [], []>} : vector<8x128xbf16>, vector<128x128xbf16>, vector<8x128xf32> -> vector<8x128xf32>
    %36 = arith.addf %33, %35 : vector<8x128xf32>
    %37 = math.tanh %36 : vector<8x128xf32>
    %c4_i32 = arith.constant 4 : i32
    %38 = arith.index_cast %c4_i32 : i32 to index
    %c0_23 = arith.constant 0 : index
    %c0_24 = arith.constant 0 : index
    %39 = vector.load %arg5[%38, %c0_23, %c0_24] : memref<8x8x128xf32, #tpu.memory_space<vmem>>, vector<1x8x128xf32>
    %40 = vector.shape_cast %39 : vector<1x8x128xf32> to vector<8x128xf32>
    %41 = arith.truncf %37 : vector<8x128xf32> to vector<8x128xbf16>
    %cst_25 = arith.constant dense<0.000000e+00> : vector<8x128xf32>
    %42 = tpu.matmul %41, %8, %cst_25 {dimension_numbers = #tpu.dot_dimension_numbers<[1], [0], [0], [1], [0, 0, 1, 1], [], []>} : vector<8x128xbf16>, vector<128x128xbf16>, vector<8x128xf32> -> vector<8x128xf32>
    %43 = arith.addf %40, %42 : vector<8x128xf32>
    %44 = math.tanh %43 : vector<8x128xf32>
    %c5_i32 = arith.constant 5 : i32
    %45 = arith.index_cast %c5_i32 : i32 to index
    %c0_26 = arith.constant 0 : index
    %c0_27 = arith.constant 0 : index
    %46 = vector.load %arg5[%45, %c0_26, %c0_27] : memref<8x8x128xf32, #tpu.memory_space<vmem>>, vector<1x8x128xf32>
    %47 = vector.shape_cast %46 : vector<1x8x128xf32> to vector<8x128xf32>
    %48 = arith.truncf %44 : vector<8x128xf32> to vector<8x128xbf16>
    %cst_28 = arith.constant dense<0.000000e+00> : vector<8x128xf32>
    %49 = tpu.matmul %48, %8, %cst_28 {dimension_numbers = #tpu.dot_dimension_numbers<[1], [0], [0], [1], [0, 0, 1, 1], [], []>} : vector<8x128xbf16>, vector<128x128xbf16>, vector<8x128xf32> -> vector<8x128xf32>
    %50 = arith.addf %47, %49 : vector<8x128xf32>
    %51 = math.tanh %50 : vector<8x128xf32>
    %c6_i32 = arith.constant 6 : i32
    %52 = arith.index_cast %c6_i32 : i32 to index
    %c0_29 = arith.constant 0 : index
    %c0_30 = arith.constant 0 : index
    %53 = vector.load %arg5[%52, %c0_29, %c0_30] : memref<8x8x128xf32, #tpu.memory_space<vmem>>, vector<1x8x128xf32>
    %54 = vector.shape_cast %53 : vector<1x8x128xf32> to vector<8x128xf32>
    %55 = arith.truncf %51 : vector<8x128xf32> to vector<8x128xbf16>
    %cst_31 = arith.constant dense<0.000000e+00> : vector<8x128xf32>
    %56 = tpu.matmul %55, %8, %cst_31 {dimension_numbers = #tpu.dot_dimension_numbers<[1], [0], [0], [1], [0, 0, 1, 1], [], []>} : vector<8x128xbf16>, vector<128x128xbf16>, vector<8x128xf32> -> vector<8x128xf32>
    %57 = arith.addf %54, %56 : vector<8x128xf32>
    %58 = math.tanh %57 : vector<8x128xf32>
    %c7_i32 = arith.constant 7 : i32
    %59 = arith.index_cast %c7_i32 : i32 to index
    %c0_32 = arith.constant 0 : index
    %c0_33 = arith.constant 0 : index
    %60 = vector.load %arg5[%59, %c0_32, %c0_33] : memref<8x8x128xf32, #tpu.memory_space<vmem>>, vector<1x8x128xf32>
    %61 = vector.shape_cast %60 : vector<1x8x128xf32> to vector<8x128xf32>
    %62 = arith.truncf %58 : vector<8x128xf32> to vector<8x128xbf16>
    %cst_34 = arith.constant dense<0.000000e+00> : vector<8x128xf32>
    %63 = tpu.matmul %62, %8, %cst_34 {dimension_numbers = #tpu.dot_dimension_numbers<[1], [0], [0], [1], [0, 0, 1, 1], [], []>} : vector<8x128xbf16>, vector<128x128xbf16>, vector<8x128xf32> -> vector<8x128xf32>
    %64 = arith.addf %61, %63 : vector<8x128xf32>
    %65 = math.tanh %64 : vector<8x128xf32>
    %c8_i32 = arith.constant 8 : i32
    %c0_35 = arith.constant 0 : index
    %c0_36 = arith.constant 0 : index
    %66 = vector.load %arg4[%c0_35, %c0_36] : memref<8x128xf32, #tpu.memory_space<vmem>>, vector<8x128xf32>
    tpu.vector_store %arg4[%c0_35, %c0_36], %65 {strides = array<i32>} : memref<8x128xf32, #tpu.memory_space<vmem>>, vector<8x128xf32>,
    return
  }
}

</mosaic_0001>

<llo_original>
// kernel: tpu_custom_call.1
$region0: #{tpu_custom_call.1}
  #allocation0 [shape = 'u32[]', space=smem, size = 0x4, offset = 0x4, fixed_abs, tag = 'smem constant byte address 0x4 - core index']
  #allocation1 [shape = 'u32[144,128]{1,0:T(1,128)}', space=vmem, size = 0x12000, scoped, tag = 'internal scratch']
  #allocation2 [shape = 'f32[8,8,128]{2,1,0:T(8,128)}', space=vmem, size = 0x8000, scoped, tag = 'scratch operand']
  %s0 = inlined_call_operand.hbm [shape: bf16[64,128], index: 0, kind: input, shape index: {}]
  %s1 = inlined_call_operand.hbm [shape: bf16[128,128], index: 1, kind: input, shape index: {}]
  %s2 = inlined_call_operand.hbm [shape: bf16[128,128], index: 2, kind: input, shape index: {}]
  %s3 = inlined_call_operand.vmem [shape: f32[1,128], index: 3, kind: input, shape index: {}]
  %s4 = inlined_call_operand.hbm [shape: f32[8,128], index: 4, kind: output, shape index: {}]
  %s5 = sld [smem:[#allocation0]]
  $region38: #{tpu_custom_call.1} parent=0
    _
  %s7 = ssub.s32 1, %s5
  %s8 = scalar_select 0, %s7, %s5
  $region1: #{tpu_custom_call.1} parent=0
    #allocation3 [shape = 'u8[16384]{0}', space=vmem, size = 0x4000, scoped, tag = 'input window, operand 0, single buffered']
    #allocation4 [shape = 's32[1]{0}', space=sflag, size = 0x4, scoped, tag = 'scoped memory for tpu_custom_call.1']
    #allocation5 [shape = 's32[1]{0}', space=sflag, size = 0x4, scoped, tag = 'scoped memory for tpu_custom_call.1']
    #allocation6 [shape = 'u8[32768]{0}', space=vmem, size = 0x8000, scoped, tag = 'input window, operand 1, single buffered']
    #allocation7 [shape = 's32[1]{0}', space=sflag, size = 0x4, scoped, tag = 'scoped memory for tpu_custom_call.1']
    #allocation8 [shape = 'u8[32768]{0}', space=vmem, size = 0x8000, scoped, tag = 'input window, operand 2, single buffered']
    #allocation9 [shape = 'u8[4096]{0}', space=vmem, size = 0x1000, scoped, tag = 'output window, operand 0, single buffered']
    %9 = vsyncpa [#allocation4], 0
    %10 = vsyncpa [#allocation7], 0
    %11 = vsyncpa [#allocation5], 0
    // Predicated region
    $region2: #{tpu_custom_call.1} parent=1 // pred_check
      _
    $region3: #{tpu_custom_call.1} parent=1 // pred_check_branch
      %13 = sbr.rel (0) target = $region5
    $region4: #{tpu_custom_call.1} parent=1 // pred_region
      %s15 = ssub.s32 512, 512
      %16 = vsyncadd [#allocation4], %s15
      %s17 = sshll.u32 [#allocation3], 4
      %s18 = int_to_ptr.vmem [resolvable:$true] %s17
      %23 = dma.hbm_to_vmem [thread:$0]  %s0, 512, %s18, [#allocation4], 64, 64, 4
    $region5: #{tpu_custom_call.1} parent=1 // pred_fallthru
      _
    // Predicated region
    $region6: #{tpu_custom_call.1} parent=1 // pred_check
      _
    $region7: #{tpu_custom_call.1} parent=1 // pred_check_branch
      %25 = sbr.rel (0) target = $region9
    $region8: #{tpu_custom_call.1} parent=1 // pred_region
      %s27 = ssub.s32 1024, 1024
      %28 = vsyncadd [#allocation7], %s27
      %s29 = sshll.u32 [#allocation6], 4
      %s30 = int_to_ptr.vmem [resolvable:$true] %s29
      %35 = dma.hbm_to_vmem [thread:$0]  %s1, 1024, %s30, [#allocation7], 64, 64, 4
    $region9: #{tpu_custom_call.1} parent=1 // pred_fallthru
      _
    // Predicated region
    $region10: #{tpu_custom_call.1} parent=1 // pred_check
      _
    $region11: #{tpu_custom_call.1} parent=1 // pred_check_branch
      %37 = sbr.rel (0) target = $region13
    $region12: #{tpu_custom_call.1} parent=1 // pred_region
      %s39 = ssub.s32 1024, 1024
      %40 = vsyncadd [#allocation7], %s39
      %s41 = sshll.u32 [#allocation8], 4
      %s42 = int_to_ptr.vmem [resolvable:$true] %s41
      %47 = dma.hbm_to_vmem [thread:$0]  %s2, 1024, %s42, [#allocation7], 64, 64, 4
    $region13: #{tpu_custom_call.1} parent=1 // pred_fallthru
      _
    // Predicated region
    $region14: #{tpu_custom_call.1} parent=1 // pred_check
      _
    $region15: #{tpu_custom_call.1} parent=1 // pred_check_branch
      %49 = sbr.rel (0) target = $region17
    $region16: #{tpu_custom_call.1} parent=1 // pred_region
      _
    $region17: #{tpu_custom_call.1} parent=1 // pred_fallthru
      _
    // Predicated region
    $region18: #{tpu_custom_call.1} parent=1 // pred_check
      _
    $region19: #{tpu_custom_call.1} parent=1 // pred_check_branch
      %51 = sbr.rel (0) target = $region21
    $region20: #{tpu_custom_call.1} parent=1 // pred_region
      %52 = dma.done [#allocation4], 512
    $region21: #{tpu_custom_call.1} parent=1 // pred_fallthru
      _
    // Predicated region
    $region22: #{tpu_custom_call.1} parent=1 // pred_check
      _
    $region23: #{tpu_custom_call.1} parent=1 // pred_check_branch
      %54 = sbr.rel (0) target = $region25
    $region24: #{tpu_custom_call.1} parent=1 // pred_region
      %55 = dma.done [#allocation7], 1024
    $region25: #{tpu_custom_call.1} parent=1 // pred_fallthru
      _
    // Predicated region
    $region26: #{tpu_custom_call.1} parent=1 // pred_check
      _
    $region27: #{tpu_custom_call.1} parent=1 // pred_check_branch
      %57 = sbr.rel (0) target = $region29
    $region28: #{tpu_custom_call.1} parent=1 // pred_region
      %58 = dma.done [#allocation7], 1024
    $region29: #{tpu_custom_call.1} parent=1 // pred_fallthru
      _
    %v60 = vld [vmem:[#allocation3] sm:$0xf]
    %v61 = vld [vmem:[#allocation3 + $0x4] sm:$0xf]
    %v62 = vld [vmem:[#allocation3 + $0x8] sm:$0xf]
    %v63 = vld [vmem:[#allocation3 + $0xc] sm:$0xf]
    %v64 = vld [vmem:[#allocation3 + $0x10] sm:$0xf]
    %v65 = vld [vmem:[#allocation3 + $0x14] sm:$0xf]
    %v66 = vld [vmem:[#allocation3 + $0x18] sm:$0xf]
    %v67 = vld [vmem:[#allocation3 + $0x1c] sm:$0xf]
    %v68 = vld [vmem:[#allocation6] sm:$0xf]
    %v69 = vld [vmem:[#allocation6 + $0x4] sm:$0xf]
    %v70 = vld [vmem:[#allocation6 + $0x8] sm:$0xf]
    %v71 = vld [vmem:[#allocation6 + $0xc] sm:$0xf]
    %v72 = vld [vmem:[#allocation6 + $0x10] sm:$0xf]
    %v73 = vld [vmem:[#allocation6 + $0x14] sm:$0xf]
    %v74 = vld [vmem:[#allocation6 + $0x18] sm:$0xf]
    %v75 = vld [vmem:[#allocation6 + $0x1c] sm:$0xf]
    %v76 = vld [vmem:[#allocation6 + $0x20] sm:$0xf]
    %v77 = vld [vmem:[#allocation6 + $0x24] sm:$0xf]
    %v78 = vld [vmem:[#allocation6 + $0x28] sm:$0xf]
    %v79 = vld [vmem:[#allocation6 + $0x2c] sm:$0xf]
    %v80 = vld [vmem:[#allocation6 + $0x30] sm:$0xf]
    %v81 = vld [vmem:[#allocation6 + $0x34] sm:$0xf]
    %v82 = vld [vmem:[#allocation6 + $0x38] sm:$0xf]
    %v83 = vld [vmem:[#allocation6 + $0x3c] sm:$0xf]
    %v84 = vld [vmem:[%s3] sm:$0x1]
    %v86 = vlaneseq
    %v87 = vshrl.u32 %v86, 7
    %v88 = vsub.s32 0, %v87
    %v89 = vrot.slane %v84, %v88
    %v99 = vunpack.c.l.b16 %v60
    %v100 = vunpack.c.l.b16 %v61
    %v101 = vunpack.c.l.b16 %v62
    %v102 = vunpack.c.l.b16 %v63
    %v103 = vunpack.c.l.b16 %v64
    %v104 = vunpack.c.l.b16 %v65
    %v105 = vunpack.c.l.b16 %v66
    %v106 = vunpack.c.l.b16 %v67
    %v107 = vpack.c.b16 %v100, %v99
    %v108 = vpack.c.b16 %v102, %v101
    %v109 = vpack.c.b16 %v104, %v103
    %v110 = vpack.c.b16 %v106, %v105
    %v131 = vunpack.c.l.b16 %v68
    %v132 = vunpack.c.l.b16 %v69
    %v133 = vunpack.c.l.b16 %v70
    %v134 = vunpack.c.l.b16 %v71
    %v135 = vunpack.c.l.b16 %v72
    %v136 = vunpack.c.l.b16 %v73
    %v137 = vunpack.c.l.b16 %v74
    %v138 = vunpack.c.l.b16 %v75
    %v139 = vunpack.c.l.b16 %v76
    %v140 = vunpack.c.l.b16 %v77
    %v141 = vunpack.c.l.b16 %v78
    %v142 = vunpack.c.l.b16 %v79
    %v143 = vunpack.c.l.b16 %v80
    %v144 = vunpack.c.l.b16 %v81
    %v145 = vunpack.c.l.b16 %v82
    %v146 = vunpack.c.l.b16 %v83
    %v147 = vpack.c.b16 %v132, %v131
    %v148 = vpack.c.b16 %v134, %v133
    %v149 = vpack.c.b16 %v136, %v135
    %v150 = vpack.c.b16 %v138, %v137
    %v151 = vpack.c.b16 %v140, %v139
    %v152 = vpack.c.b16 %v142, %v141
    %v153 = vpack.c.b16 %v144, %v143
    %v154 = vpack.c.b16 %v146, %v145
    %163 = vmatprep.subr.bf16.mxu0 0
    %164 = vmatpush1.bf16.msra.mxu0 %v147
    %165 = vmatprep.subr.bf16.mxu0 0
    %166 = vmatpush1.bf16.msra.mxu0 %v148
    %167 = vmatprep.subr.bf16.mxu0 0
    %168 = vmatpush1.bf16.msra.mxu0 %v149
    %169 = vmatprep.subr.bf16.mxu0 0
    %170 = vmatpush1.bf16.msra.mxu0 %v150
    %171 = vmatprep.subr.bf16.mxu0 0
    %172 = vmatpush1.bf16.msra.mxu0 %v151
    %173 = vmatprep.subr.bf16.mxu0 0
    %174 = vmatpush1.bf16.msra.mxu0 %v152
    %175 = vmatprep.subr.bf16.mxu0 0
    %176 = vmatpush1.bf16.msra.mxu0 %v153
    %177 = vmatprep.subr.bf16.mxu0 0
    %178 = vmatpush1.bf16.msra.mxu0 %v154
    %179 = vmatprep.subr.bf16.mxu0 0
    %180 = vmatpush1.bf16.msra.mxu0 0
    %181 = vmatprep.subr.bf16.mxu0 0
    %182 = vmatpush1.bf16.msra.mxu0 0
    %183 = vmatprep.subr.bf16.mxu0 0
    %184 = vmatpush1.bf16.msra.mxu0 0
    %185 = vmatprep.subr.bf16.mxu0 0
    %186 = vmatpush1.bf16.msra.mxu0 0
    %187 = vmatprep.subr.bf16.mxu0 0
    %188 = vmatpush1.bf16.msra.mxu0 0
    %189 = vmatprep.subr.bf16.mxu0 0
    %190 = vmatpush1.bf16.msra.mxu0 0
    %191 = vmatprep.subr.bf16.mxu0 0
    %192 = vmatpush1.bf16.msra.mxu0 0
    %193 = vmatprep.subr.bf16.mxu0 0
    %194 = vmatpush1.bf16.msra.mxu0 0
    %195 = vmatprep.mubr.bf16.mxu0 0
    %196 = vmatmul.mubr.bf16.gmra.mrb[0].mxu0 %v107
    %v197 = vpop.f32.mrb[0].mxu0
    %v198 = vadd.f32 %v89, %v197
    %v199 = vpop.f32.mrb[0].mxu0
    %v200 = vpop.f32.mrb[0].mxu0
    %v201 = vadd.f32 %v89, %v200
    %v202 = vpop.f32.mrb[0].mxu0
    %203 = vmatprep.mubr.bf16.mxu0 0
    %204 = vmatmul.mubr.bf16.gmra.mrb[0].mxu0 %v108
    %v205 = vpop.f32.mrb[0].mxu0
    %v206 = vadd.f32 %v89, %v205
    %v207 = vpop.f32.mrb[0].mxu0
    %v208 = vpop.f32.mrb[0].mxu0
    %v209 = vadd.f32 %v89, %v208
    %v210 = vpop.f32.mrb[0].mxu0
    %211 = vmatprep.mubr.bf16.mxu0 0
    %212 = vmatmul.mubr.bf16.gmra.mrb[0].mxu0 %v109
    %v213 = vpop.f32.mrb[0].mxu0
    %v214 = vadd.f32 %v89, %v213
    %v215 = vpop.f32.mrb[0].mxu0
    %v216 = vpop.f32.mrb[0].mxu0
    %v217 = vadd.f32 %v89, %v216
    %v218 = vpop.f32.mrb[0].mxu0
    %219 = vmatprep.mubr.bf16.mxu0 0
    %220 = vmatmul.mubr.bf16.gmra.mrb[0].mxu0 %v110
    %v221 = vpop.f32.mrb[0].mxu0
    %v222 = vadd.f32 %v89, %v221
    %v223 = vpop.f32.mrb[0].mxu0
    %v224 = vpop.f32.mrb[0].mxu0
    %v225 = vadd.f32 %v89, %v224
    %v226 = vpop.f32.mrb[0].mxu0
    %227 = vdwg.mxu0
    %228 = vst [vmem:[#allocation2] sm:$0xff] %v198
    %229 = vst [vmem:[#allocation2 + $0x8] sm:$0xff] %v201
    %230 = vst [vmem:[#allocation2 + $0x10] sm:$0xff] %v206
    %231 = vst [vmem:[#allocation2 + $0x18] sm:$0xff] %v209
    %232 = vst [vmem:[#allocation2 + $0x20] sm:$0xff] %v214
    %233 = vst [vmem:[#allocation2 + $0x28] sm:$0xff] %v217
    %234 = vst [vmem:[#allocation2 + $0x30] sm:$0xff] %v222
    %235 = vst [vmem:[#allocation2 + $0x38] sm:$0xff] %v225
    %v236 = vld [vmem:[#allocation8] sm:$0xf]
    %v237 = vld [vmem:[#allocation8 + $0x4] sm:$0xf]
    %v238 = vld [vmem:[#allocation8 + $0x8] sm:$0xf]
    %v239 = vld [vmem:[#allocation8 + $0xc] sm:$0xf]
    %v240 = vld [vmem:[#allocation8 + $0x10] sm:$0xf]
    %v241 = vld [vmem:[#allocation8 + $0x14] sm:$0xf]
    %v242 = vld [vmem:[#allocation8 + $0x18] sm:$0xf]
    %v243 = vld [vmem:[#allocation8 + $0x1c] sm:$0xf]
    %v244 = vld [vmem:[#allocation8 + $0x20] sm:$0xf]
    %v245 = vld [vmem:[#allocation8 + $0x24] sm:$0xf]
    %v246 = vld [vmem:[#allocation8 + $0x28] sm:$0xf]
    %v247 = vld [vmem:[#allocation8 + $0x2c] sm:$0xf]
    %v248 = vld [vmem:[#allocation8 + $0x30] sm:$0xf]
    %v249 = vld [vmem:[#allocation8 + $0x34] sm:$0xf]
    %v250 = vld [vmem:[#allocation8 + $0x38] sm:$0xf]
    %v251 = vld [vmem:[#allocation8 + $0x3c] sm:$0xf]
    %v252 = vld [vmem:[#allocation2] sm:$0xff]
    %v269 = vunpack.c.l.b16 %v236
    %v270 = vunpack.c.l.b16 %v237
    %v271 = vunpack.c.l.b16 %v238
    %v272 = vunpack.c.l.b16 %v239
    %v273 = vunpack.c.l.b16 %v240
    %v274 = vunpack.c.l.b16 %v241
    %v275 = vunpack.c.l.b16 %v242
    %v276 = vunpack.c.l.b16 %v243
    %v277 = vunpack.c.l.b16 %v244
    %v278 = vunpack.c.l.b16 %v245
    %v279 = vunpack.c.l.b16 %v246
    %v280 = vunpack.c.l.b16 %v247
    %v281 = vunpack.c.l.b16 %v248
    %v282 = vunpack.c.l.b16 %v249
    %v283 = vunpack.c.l.b16 %v250
    %v284 = vunpack.c.l.b16 %v251
    %v285 = vpack.c.b16 %v270, %v269
    %v286 = vpack.c.b16 %v272, %v271
    %v287 = vpack.c.b16 %v274, %v273
    %v288 = vpack.c.b16 %v276, %v275
    %v289 = vpack.c.b16 %v278, %v277
    %v290 = vpack.c.b16 %v280, %v279
    %v291 = vpack.c.b16 %v282, %v281
    %v292 = vpack.c.b16 %v284, %v283
    %301 = vmatprep.subr.bf16.mxu0 0
    %302 = vmatpush1.bf16.msra.mxu0 %v285
    %303 = vmatprep.subr.bf16.mxu0 0
    %304 = vmatpush1.bf16.msra.mxu0 %v286
    %305 = vmatprep.subr.bf16.mxu0 0
    %306 = vmatpush1.bf16.msra.mxu0 %v287
    %307 = vmatprep.subr.bf16.mxu0 0
    %308 = vmatpush1.bf16.msra.mxu0 %v288
    %309 = vmatprep.subr.bf16.mxu0 0
    %310 = vmatpush1.bf16.msra.mxu0 %v289
    %311 = vmatprep.subr.bf16.mxu0 0
    %312 = vmatpush1.bf16.msra.mxu0 %v290
    %313 = vmatprep.subr.bf16.mxu0 0
    %314 = vmatpush1.bf16.msra.mxu0 %v291
    %315 = vmatprep.subr.bf16.mxu0 0
    %316 = vmatpush1.bf16.msra.mxu0 %v292
    %317 = vmatprep.subr.bf16.mxu0 0
    %318 = vmatpush1.bf16.msra.mxu0 0
    %319 = vmatprep.subr.bf16.mxu0 0
    %320 = vmatpush1.bf16.msra.mxu0 0
    %321 = vmatprep.subr.bf16.mxu0 0
    %322 = vmatpush1.bf16.msra.mxu0 0
    %323 = vmatprep.subr.bf16.mxu0 0
    %324 = vmatpush1.bf16.msra.mxu0 0
    %325 = vmatprep.subr.bf16.mxu0 0
    %326 = vmatpush1.bf16.msra.mxu0 0
    %327 = vmatprep.subr.bf16.mxu0 0
    %328 = vmatpush1.bf16.msra.mxu0 0
    %329 = vmatprep.subr.bf16.mxu0 0
    %330 = vmatpush1.bf16.msra.mxu0 0
    %331 = vmatprep.subr.bf16.mxu0 0
    %332 = vmatpush1.bf16.msra.mxu0 0
    %333 = vmatprep.mubr.bf16.mxu0 0
    %334 = vmatmul.mubr.bf16.gmra.mrb[0].mxu0 0
    %v335 = vpop.f32.mrb[0].mxu0
    %v336 = vadd.f32 0.0, %v335
    %v337 = vpop.f32.mrb[0].mxu0
    %v338 = vpop.f32.mrb[0].mxu0
    %v339 = vpop.f32.mrb[0].mxu0
    %340 = vdwg.mxu0
    %v341 = vadd.f32 %v252, %v336
    %v342 = vtanh.pop %v341
    %s343 = scalar_lea.vmem [#allocation2], 8
    %v344 = vld [vmem:[%s343] sm:$0xff]
    %v345 = vpack.c.bf16 %v342, %v342
    %346 = vmatprep.subr.bf16.mxu0 0
    %347 = vmatpush1.bf16.msra.mxu0 %v285
    %348 = vmatprep.subr.bf16.mxu0 0
    %349 = vmatpush1.bf16.msra.mxu0 %v286
    %350 = vmatprep.subr.bf16.mxu0 0
    %351 = vmatpush1.bf16.msra.mxu0 %v287
    %352 = vmatprep.subr.bf16.mxu0 0
    %353 = vmatpush1.bf16.msra.mxu0 %v288
    %354 = vmatprep.subr.bf16.mxu0 0
    %355 = vmatpush1.bf16.msra.mxu0 %v289
    %356 = vmatprep.subr.bf16.mxu0 0
    %357 = vmatpush1.bf16.msra.mxu0 %v290
    %358 = vmatprep.subr.bf16.mxu0 0
    %359 = vmatpush1.bf16.msra.mxu0 %v291
    %360 = vmatprep.subr.bf16.mxu0 0
    %361 = vmatpush1.bf16.msra.mxu0 %v292
    %362 = vmatprep.subr.bf16.mxu0 0
    %363 = vmatpush1.bf16.msra.mxu0 0
    %364 = vmatprep.subr.bf16.mxu0 0
    %365 = vmatpush1.bf16.msra.mxu0 0
    %366 = vmatprep.subr.bf16.mxu0 0
    %367 = vmatpush1.bf16.msra.mxu0 0
    %368 = vmatprep.subr.bf16.mxu0 0
    %369 = vmatpush1.bf16.msra.mxu0 0
    %370 = vmatprep.subr.bf16.mxu0 0
    %371 = vmatpush1.bf16.msra.mxu0 0
    %372 = vmatprep.subr.bf16.mxu0 0
    %373 = vmatpush1.bf16.msra.mxu0 0
    %374 = vmatprep.subr.bf16.mxu0 0
    %375 = vmatpush1.bf16.msra.mxu0 0
    %376 = vmatprep.subr.bf16.mxu0 0
    %377 = vmatpush1.bf16.msra.mxu0 0
    %378 = vmatprep.mubr.bf16.mxu0 0
    %379 = vmatmul.mubr.bf16.gmra.mrb[0].mxu0 %v345
    %v380 = vpop.f32.mrb[0].mxu0
    %v381 = vadd.f32 0.0, %v380
    %v382 = vpop.f32.mrb[0].mxu0
    %v383 = vpop.f32.mrb[0].mxu0
    %v384 = vpop.f32.mrb[0].mxu0
    %385 = vdwg.mxu0
    %v386 = vadd.f32 %v344, %v381
    %v387 = vtanh.pop %v386
    %s388 = scalar_lea.vmem [#allocation2], 16
    %v389 = vld [vmem:[%s388] sm:$0xff]
    %v390 = vpack.c.bf16 %v387, %v387
    %391 = vmatprep.subr.bf16.mxu0 0
    %392 = vmatpush1.bf16.msra.mxu0 %v285
    %393 = vmatprep.subr.bf16.mxu0 0
    %394 = vmatpush1.bf16.msra.mxu0 %v286
    %395 = vmatprep.subr.bf16.mxu0 0
    %396 = vmatpush1.bf16.msra.mxu0 %v287
    %397 = vmatprep.subr.bf16.mxu0 0
    %398 = vmatpush1.bf16.msra.mxu0 %v288
    %399 = vmatprep.subr.bf16.mxu0 0
    %400 = vmatpush1.bf16.msra.mxu0 %v289
    %401 = vmatprep.subr.bf16.mxu0 0
    %402 = vmatpush1.bf16.msra.mxu0 %v290
    %403 = vmatprep.subr.bf16.mxu0 0
    %404 = vmatpush1.bf16.msra.mxu0 %v291
    %405 = vmatprep.subr.bf16.mxu0 0
    %406 = vmatpush1.bf16.msra.mxu0 %v292
    %407 = vmatprep.subr.bf16.mxu0 0
    %408 = vmatpush1.bf16.msra.mxu0 0
    %409 = vmatprep.subr.bf16.mxu0 0
    %410 = vmatpush1.bf16.msra.mxu0 0
    %411 = vmatprep.subr.bf16.mxu0 0
    %412 = vmatpush1.bf16.msra.mxu0 0
    %413 = vmatprep.subr.bf16.mxu0 0
    %414 = vmatpush1.bf16.msra.mxu0 0
    %415 = vmatprep.subr.bf16.mxu0 0
    %416 = vmatpush1.bf16.msra.mxu0 0
    %417 = vmatprep.subr.bf16.mxu0 0
    %418 = vmatpush1.bf16.msra.mxu0 0
    %419 = vmatprep.subr.bf16.mxu0 0
    %420 = vmatpush1.bf16.msra.mxu0 0
    %421 = vmatprep.subr.bf16.mxu0 0
    %422 = vmatpush1.bf16.msra.mxu0 0
    %423 = vmatprep.mubr.bf16.mxu0 0
    %424 = vmatmul.mubr.bf16.gmra.mrb[0].mxu0 %v390
    %v425 = vpop.f32.mrb[0].mxu0
    %v426 = vadd.f32 0.0, %v425
    %v427 = vpop.f32.mrb[0].mxu0
    %v428 = vpop.f32.mrb[0].mxu0
    %v429 = vpop.f32.mrb[0].mxu0
    %430 = vdwg.mxu0
    %v431 = vadd.f32 %v389, %v426
    %v432 = vtanh.pop %v431
    %s433 = scalar_lea.vmem [#allocation2], 24
    %v434 = vld [vmem:[%s433] sm:$0xff]
    %v435 = vpack.c.bf16 %v432, %v432
    %436 = vmatprep.subr.bf16.mxu0 0
    %437 = vmatpush1.bf16.msra.mxu0 %v285
    %438 = vmatprep.subr.bf16.mxu0 0
    %439 = vmatpush1.bf16.msra.mxu0 %v286
    %440 = vmatprep.subr.bf16.mxu0 0
    %441 = vmatpush1.bf16.msra.mxu0 %v287
    %442 = vmatprep.subr.bf16.mxu0 0
    %443 = vmatpush1.bf16.msra.mxu0 %v288
    %444 = vmatprep.subr.bf16.mxu0 0
    %445 = vmatpush1.bf16.msra.mxu0 %v289
    %446 = vmatprep.subr.bf16.mxu0 0
    %447 = vmatpush1.bf16.msra.mxu0 %v290
    %448 = vmatprep.subr.bf16.mxu0 0
    %449 = vmatpush1.bf16.msra.mxu0 %v291
    %450 = vmatprep.subr.bf16.mxu0 0
    %451 = vmatpush1.bf16.msra.mxu0 %v292
    %452 = vmatprep.subr.bf16.mxu0 0
    %453 = vmatpush1.bf16.msra.mxu0 0
    %454 = vmatprep.subr.bf16.mxu0 0
    %455 = vmatpush1.bf16.msra.mxu0 0
    %456 = vmatprep.subr.bf16.mxu0 0
    %457 = vmatpush1.bf16.msra.mxu0 0
    %458 = vmatprep.subr.bf16.mxu0 0
    %459 = vmatpush1.bf16.msra.mxu0 0
    %460 = vmatprep.subr.bf16.mxu0 0
    %461 = vmatpush1.bf16.msra.mxu0 0
    %462 = vmatprep.subr.bf16.mxu0 0
    %463 = vmatpush1.bf16.msra.mxu0 0
    %464 = vmatprep.subr.bf16.mxu0 0
    %465 = vmatpush1.bf16.msra.mxu0 0
    %466 = vmatprep.subr.bf16.mxu0 0
    %467 = vmatpush1.bf16.msra.mxu0 0
    %468 = vmatprep.mubr.bf16.mxu0 0
    %469 = vmatmul.mubr.bf16.gmra.mrb[0].mxu0 %v435
    %v470 = vpop.f32.mrb[0].mxu0
    %v471 = vadd.f32 0.0, %v470
    %v472 = vpop.f32.mrb[0].mxu0
    %v473 = vpop.f32.mrb[0].mxu0
    %v474 = vpop.f32.mrb[0].mxu0
    %475 = vdwg.mxu0
    %v476 = vadd.f32 %v434, %v471
    %v477 = vtanh.pop %v476
    %s478 = scalar_lea.vmem [#allocation2], 32
    %v479 = vld [vmem:[%s478] sm:$0xff]
    %v480 = vpack.c.bf16 %v477, %v477
    %481 = vmatprep.subr.bf16.mxu0 0
    %482 = vmatpush1.bf16.msra.mxu0 %v285
    %483 = vmatprep.subr.bf16.mxu0 0
    %484 = vmatpush1.bf16.msra.mxu0 %v286
    %485 = vmatprep.subr.bf16.mxu0 0
    %486 = vmatpush1.bf16.msra.mxu0 %v287
    %487 = vmatprep.subr.bf16.mxu0 0
    %488 = vmatpush1.bf16.msra.mxu0 %v288
    %489 = vmatprep.subr.bf16.mxu0 0
    %490 = vmatpush1.bf16.msra.mxu0 %v289
    %491 = vmatprep.subr.bf16.mxu0 0
    %492 = vmatpush1.bf16.msra.mxu0 %v290
    %493 = vmatprep.subr.bf16.mxu0 0
    %494 = vmatpush1.bf16.msra.mxu0 %v291
    %495 = vmatprep.subr.bf16.mxu0 0
    %496 = vmatpush1.bf16.msra.mxu0 %v292
    %497 = vmatprep.subr.bf16.mxu0 0
    %498 = vmatpush1.bf16.msra.mxu0 0
    %499 = vmatprep.subr.bf16.mxu0 0
    %500 = vmatpush1.bf16.msra.mxu0 0
    %501 = vmatprep.subr.bf16.mxu0 0
    %502 = vmatpush1.bf16.msra.mxu0 0
    %503 = vmatprep.subr.bf16.mxu0 0
    %504 = vmatpush1.bf16.msra.mxu0 0
    %505 = vmatprep.subr.bf16.mxu0 0
    %506 = vmatpush1.bf16.msra.mxu0 0
    %507 = vmatprep.subr.bf16.mxu0 0
    %508 = vmatpush1.bf16.msra.mxu0 0
    %509 = vmatprep.subr.bf16.mxu0 0
    %510 = vmatpush1.bf16.msra.mxu0 0
    %511 = vmatprep.subr.bf16.mxu0 0
    %512 = vmatpush1.bf16.msra.mxu0 0
    %513 = vmatprep.mubr.bf16.mxu0 0
    %514 = vmatmul.mubr.bf16.gmra.mrb[0].mxu0 %v480
    %v515 = vpop.f32.mrb[0].mxu0
    %v516 = vadd.f32 0.0, %v515
    %v517 = vpop.f32.mrb[0].mxu0
    %v518 = vpop.f32.mrb[0].mxu0
    %v519 = vpop.f32.mrb[0].mxu0
    %520 = vdwg.mxu0
    %v521 = vadd.f32 %v479, %v516
    %v522 = vtanh.pop %v521
    %s523 = scalar_lea.vmem [#allocation2], 40
    %v524 = vld [vmem:[%s523] sm:$0xff]
    %v525 = vpack.c.bf16 %v522, %v522
    %526 = vmatprep.subr.bf16.mxu0 0
    %527 = vmatpush1.bf16.msra.mxu0 %v285
    %528 = vmatprep.subr.bf16.mxu0 0
    %529 = vmatpush1.bf16.msra.mxu0 %v286
    %530 = vmatprep.subr.bf16.mxu0 0
    %531 = vmatpush1.bf16.msra.mxu0 %v287
    %532 = vmatprep.subr.bf16.mxu0 0
    %533 = vmatpush1.bf16.msra.mxu0 %v288
    %534 = vmatprep.subr.bf16.mxu0 0
    %535 = vmatpush1.bf16.msra.mxu0 %v289
    %536 = vmatprep.subr.bf16.mxu0 0
    %537 = vmatpush1.bf16.msra.mxu0 %v290
    %538 = vmatprep.subr.bf16.mxu0 0
    %539 = vmatpush1.bf16.msra.mxu0 %v291
    %540 = vmatprep.subr.bf16.mxu0 0
    %541 = vmatpush1.bf16.msra.mxu0 %v292
    %542 = vmatprep.subr.bf16.mxu0 0
    %543 = vmatpush1.bf16.msra.mxu0 0
    %544 = vmatprep.subr.bf16.mxu0 0
    %545 = vmatpush1.bf16.msra.mxu0 0
    %546 = vmatprep.subr.bf16.mxu0 0
    %547 = vmatpush1.bf16.msra.mxu0 0
    %548 = vmatprep.subr.bf16.mxu0 0
    %549 = vmatpush1.bf16.msra.mxu0 0
    %550 = vmatprep.subr.bf16.mxu0 0
    %551 = vmatpush1.bf16.msra.mxu0 0
    %552 = vmatprep.subr.bf16.mxu0 0
    %553 = vmatpush1.bf16.msra.mxu0 0
    %554 = vmatprep.subr.bf16.mxu0 0
    %555 = vmatpush1.bf16.msra.mxu0 0
    %556 = vmatprep.subr.bf16.mxu0 0
    %557 = vmatpush1.bf16.msra.mxu0 0
    %558 = vmatprep.mubr.bf16.mxu0 0
    %559 = vmatmul.mubr.bf16.gmra.mrb[0].mxu0 %v525
    %v560 = vpop.f32.mrb[0].mxu0
    %v561 = vadd.f32 0.0, %v560
    %v562 = vpop.f32.mrb[0].mxu0
    %v563 = vpop.f32.mrb[0].mxu0
    %v564 = vpop.f32.mrb[0].mxu0
    %565 = vdwg.mxu0
    %v566 = vadd.f32 %v524, %v561
    %v567 = vtanh.pop %v566
    %s568 = scalar_lea.vmem [#allocation2], 48
    %v569 = vld [vmem:[%s568] sm:$0xff]
    %v570 = vpack.c.bf16 %v567, %v567
    %571 = vmatprep.subr.bf16.mxu0 0
    %572 = vmatpush1.bf16.msra.mxu0 %v285
    %573 = vmatprep.subr.bf16.mxu0 0
    %574 = vmatpush1.bf16.msra.mxu0 %v286
    %575 = vmatprep.subr.bf16.mxu0 0
    %576 = vmatpush1.bf16.msra.mxu0 %v287
    %577 = vmatprep.subr.bf16.mxu0 0
    %578 = vmatpush1.bf16.msra.mxu0 %v288
    %579 = vmatprep.subr.bf16.mxu0 0
    %580 = vmatpush1.bf16.msra.mxu0 %v289
    %581 = vmatprep.subr.bf16.mxu0 0
    %582 = vmatpush1.bf16.msra.mxu0 %v290
    %583 = vmatprep.subr.bf16.mxu0 0
    %584 = vmatpush1.bf16.msra.mxu0 %v291
    %585 = vmatprep.subr.bf16.mxu0 0
    %586 = vmatpush1.bf16.msra.mxu0 %v292
    %587 = vmatprep.subr.bf16.mxu0 0
    %588 = vmatpush1.bf16.msra.mxu0 0
    %589 = vmatprep.subr.bf16.mxu0 0
    %590 = vmatpush1.bf16.msra.mxu0 0
    %591 = vmatprep.subr.bf16.mxu0 0
    %592 = vmatpush1.bf16.msra.mxu0 0
    %593 = vmatprep.subr.bf16.mxu0 0
    %594 = vmatpush1.bf16.msra.mxu0 0
    %595 = vmatprep.subr.bf16.mxu0 0
    %596 = vmatpush1.bf16.msra.mxu0 0
    %597 = vmatprep.subr.bf16.mxu0 0
    %598 = vmatpush1.bf16.msra.mxu0 0
    %599 = vmatprep.subr.bf16.mxu0 0
    %600 = vmatpush1.bf16.msra.mxu0 0
    %601 = vmatprep.subr.bf16.mxu0 0
    %602 = vmatpush1.bf16.msra.mxu0 0
    %603 = vmatprep.mubr.bf16.mxu0 0
    %604 = vmatmul.mubr.bf16.gmra.mrb[0].mxu0 %v570
    %v605 = vpop.f32.mrb[0].mxu0
    %v606 = vadd.f32 0.0, %v605
    %v607 = vpop.f32.mrb[0].mxu0
    %v608 = vpop.f32.mrb[0].mxu0
    %v609 = vpop.f32.mrb[0].mxu0
    %610 = vdwg.mxu0
    %v611 = vadd.f32 %v569, %v606
    %v612 = vtanh.pop %v611
    %s613 = scalar_lea.vmem [#allocation2], 56
    %v614 = vld [vmem:[%s613] sm:$0xff]
    %v615 = vpack.c.bf16 %v612, %v612
    %616 = vmatprep.subr.bf16.mxu0 0
    %617 = vmatpush1.bf16.msra.mxu0 %v285
    %618 = vmatprep.subr.bf16.mxu0 0
    %619 = vmatpush1.bf16.msra.mxu0 %v286
    %620 = vmatprep.subr.bf16.mxu0 0
    %621 = vmatpush1.bf16.msra.mxu0 %v287
    %622 = vmatprep.subr.bf16.mxu0 0
    %623 = vmatpush1.bf16.msra.mxu0 %v288
    %624 = vmatprep.subr.bf16.mxu0 0
    %625 = vmatpush1.bf16.msra.mxu0 %v289
    %626 = vmatprep.subr.bf16.mxu0 0
    %627 = vmatpush1.bf16.msra.mxu0 %v290
    %628 = vmatprep.subr.bf16.mxu0 0
    %629 = vmatpush1.bf16.msra.mxu0 %v291
    %630 = vmatprep.subr.bf16.mxu0 0
    %631 = vmatpush1.bf16.msra.mxu0 %v292
    %632 = vmatprep.subr.bf16.mxu0 0
    %633 = vmatpush1.bf16.msra.mxu0 0
    %634 = vmatprep.subr.bf16.mxu0 0
    %635 = vmatpush1.bf16.msra.mxu0 0
    %636 = vmatprep.subr.bf16.mxu0 0
    %637 = vmatpush1.bf16.msra.mxu0 0
    %638 = vmatprep.subr.bf16.mxu0 0
    %639 = vmatpush1.bf16.msra.mxu0 0
    %640 = vmatprep.subr.bf16.mxu0 0
    %641 = vmatpush1.bf16.msra.mxu0 0
    %642 = vmatprep.subr.bf16.mxu0 0
    %643 = vmatpush1.bf16.msra.mxu0 0
    %644 = vmatprep.subr.bf16.mxu0 0
    %645 = vmatpush1.bf16.msra.mxu0 0
    %646 = vmatprep.subr.bf16.mxu0 0
    %647 = vmatpush1.bf16.msra.mxu0 0
    %648 = vmatprep.mubr.bf16.mxu0 0
    %649 = vmatmul.mubr.bf16.gmra.mrb[0].mxu0 %v615
    %v650 = vpop.f32.mrb[0].mxu0
    %v651 = vadd.f32 0.0, %v650
    %v652 = vpop.f32.mrb[0].mxu0
    %v653 = vpop.f32.mrb[0].mxu0
    %v654 = vpop.f32.mrb[0].mxu0
    %655 = vdwg.mxu0
    %v656 = vadd.f32 %v614, %v651
    %v657 = vtanh.pop %v656
    %658 = vst [vmem:[#allocation9] sm:$0xff] %v657
    // Predicated region
    $region30: #{tpu_custom_call.1} parent=1 // pred_check
      _
    $region31: #{tpu_custom_call.1} parent=1 // pred_check_branch
      %660 = sbr.rel (0) target = $region33
    $region32: #{tpu_custom_call.1} parent=1 // pred_region
      %s662 = ssub.s32 128, 128
      %663 = vsyncadd [#allocation5], %s662
      %s665 = sshll.u32 [#allocation9], 4
      %s666 = int_to_ptr.vmem [resolvable:$true] %s665
      %668 = dma.vmem_to_hbm [thread:$0]  %s666, 128, %s4, [#allocation5]
    $region33: #{tpu_custom_call.1} parent=1 // pred_fallthru
      _
    // Predicated region
    $region34: #{tpu_custom_call.1} parent=1 // pred_check
      _
    $region35: #{tpu_custom_call.1} parent=1 // pred_check_branch
      %670 = sbr.rel (0) target = $region37
    $region36: #{tpu_custom_call.1} parent=1 // pred_region
      %671 = dma.done [#allocation5], 128
    $region37: #{tpu_custom_call.1} parent=1 // pred_fallthru
      _
    %672 = vsyncpa [#allocation4], 1
    %673 = vsyncpa [#allocation7], 1
    %674 = vsyncpa [#allocation5], 1

</llo_original>
